<compile_context>
chip_gen: v6e
topology: v6e:2x2x1
jax: 0.10.0
libtpu: 0.0.40
codegen_flags: <defaults>
</compile_context>

<pallas_src>
import functools

import jax
import jax.numpy as jnp
from jax import lax
from jax.experimental import pallas as pl
from jax.experimental.pallas import tpu as pltpu


def _round_up(n, m):
    return ((n + m - 1) // m) * m


def _value_constrain(x, ctype):
    # Mirrors the PyTorch module exactly:
    #   'sigmoid': 2*sigmoid(x) - 1   (mathematically == tanh(x/2))
    #   'tanh'   : tanh(0.5*x)
    #   else     : identity
    if ctype == "sigmoid":
        return 2.0 * jax.nn.sigmoid(x) - 1.0
    elif ctype == "tanh":
        return jnp.tanh(0.5 * x)
    else:
        return x


def _bias_layer_kernel(x_ref, wt_ref, b_ref, o_ref, *, bias_first):
    x = x_ref[...].astype(jnp.float32)

    # F.normalize(x, dim=-1): x / max(||x||_2, 1e-12)
    #   == x * rsqrt(max(sum(x^2), 1e-24))
    sumsq = jnp.sum(x * x, axis=-1, keepdims=True)
    x = x * lax.rsqrt(jnp.maximum(sumsq, 1e-24))

    wt = wt_ref[...]   # (Dp, Dp): constrained W, already transposed (in, out)
    b = b_ref[...]     # (1, Dp):  constrained bias

    if bias_first:
        x = x + b
        y = jnp.dot(x, wt, preferred_element_type=jnp.float32)
    else:
        y = jnp.dot(x, wt, preferred_element_type=jnp.float32)
        y = y + b

    o_ref[...] = y.astype(o_ref.dtype)


def bias_layer_forward(x, w, b, *, constrain_type="sigmoid", bias_first=False,
                       use_bias=True, use_weight=True, row_tile=None):
    """x: (N, D); w: (D, D) in nn.Linear (out, in) layout; b: (1, D).

    use_bias / use_weight mirror the module's `bias` / `weight_matrix` flags
    (the disabled ones collapse to zero-bias / identity-W, which is exact).
    """
    N, D = x.shape
    assert w.shape == (D, D) and b.shape == (1, D)

    # ---- one-time parameter prep in plain JAX (tiny: D^2 + D elements) ----
    if use_weight:
        wt = _value_constrain(w.astype(jnp.float32), constrain_type).T  # (in, out)
    else:
        wt = jnp.eye(D, dtype=jnp.float32)
    if use_bias:
        b_c = _value_constrain(b.astype(jnp.float32), constrain_type)
    else:
        b_c = jnp.zeros((1, D), dtype=jnp.float32)

    # ---- lane-dense feature padding (exact; see header) ----
    Dp = max(128, _round_up(D, 128))

    # ---- row tile from a ~2 MiB byte budget, multiple of 8, capped at 8192 ----
    itemsize = jnp.dtype(x.dtype).itemsize
    if row_tile is None:
        budget_rows = max(8, ((2 << 20) // (Dp * itemsize)) // 8 * 8)
        row_tile = min(_round_up(N, 8), budget_rows, 8192)
    row_tile = max(8, (row_tile // 8) * 8)
    Np = _round_up(N, row_tile)

    # ---- zero-pad operands as needed ----
    x_p = x if (Np == N and Dp == D) else jnp.pad(x, ((0, Np - N), (0, Dp - D)))
    wt_p = wt if Dp == D else jnp.pad(wt, ((0, Dp - D), (0, Dp - D)))
    b_p = b_c if Dp == D else jnp.pad(b_c, ((0, 0), (0, Dp - D)))

    grid = (Np // row_tile,)
    kernel = functools.partial(_bias_layer_kernel, bias_first=bias_first)

    out = pl.pallas_call(
        kernel,
        out_shape=jax.ShapeDtypeStruct((Np, Dp), x.dtype),
        grid_spec=pltpu.PrefetchScalarGridSpec(
            num_scalar_prefetch=0,
            grid=grid,
            in_specs=[
                pl.BlockSpec((row_tile, Dp), lambda i: (i, 0)),  # x: streamed row tiles
                pl.BlockSpec((Dp, Dp), lambda i: (0, 0)),        # W^T: resident (DMA'd once)
                pl.BlockSpec((1, Dp), lambda i: (0, 0)),         # b: resident (DMA'd once)
            ],
            out_specs=pl.BlockSpec((row_tile, Dp), lambda i: (i, 0)),
        ),
        compiler_params=pltpu.CompilerParams(
            # No cross-step state -> safe to shard rows across cores (v7x).
            dimension_semantics=("parallel",),
            vmem_limit_bytes=32 << 20,
        ),
    )(x_p, wt_p, b_p)

    if Np != N or Dp != D:
        out = out[:N, :D]
    return out


def bias_layer_reference(x, w, b, *, constrain_type="sigmoid", bias_first=False,
                         use_bias=True, use_weight=True):
    x = x.astype(jnp.float32)
    norm = jnp.sqrt(jnp.sum(x * x, axis=-1, keepdims=True))
    x = x / jnp.maximum(norm, 1e-12)
    w_c = _value_constrain(w.astype(jnp.float32), constrain_type)
    b_c = _value_constrain(b.astype(jnp.float32), constrain_type)
    if use_bias and use_weight:
        if bias_first:
            return (x + b_c) @ w_c.T
        return x @ w_c.T + b_c
    if use_bias:
        return x + b_c
    if use_weight:
        return x @ w_c.T
    return x


def _check(x, w, b, constrain_type, bias_first, atol=2e-5, rtol=2e-5, **kw):
    out = jax.block_until_ready(
        bias_layer_forward(x, w, b, constrain_type=constrain_type,
                           bias_first=bias_first, **kw)
    )
    ref = bias_layer_reference(x, w, b, constrain_type=constrain_type,
                               bias_first=bias_first,
                               use_bias=kw.get("use_bias", True),
                               use_weight=kw.get("use_weight", True))
    assert out.shape == x.shape
    err = jnp.max(jnp.abs(out.astype(jnp.float32) - ref))
    assert jnp.allclose(out.astype(jnp.float32), ref, atol=atol, rtol=rtol), (
        f"max abs err = {err} (constrain={constrain_type}, bias_first={bias_first})"
    )


if __name__ == "__main__":
    key = jax.random.PRNGKey(0)
    k_x, k_w, k_b, k_x2, k_x3 = jax.random.split(key, 5)

    # Lane-dense case: D = 128, N = 256.
    N, D = 256, 128
    x = jax.random.normal(k_x, (N, D), dtype=jnp.float32)
    w = 0.1 * jax.random.normal(k_w, (D, D), dtype=jnp.float32)   # nn.Linear (out, in)
    b = 0.1 * jax.random.normal(k_b, (1, D), dtype=jnp.float32)   # module inits zeros; random exercises the path

    _check(x, w, b, "sigmoid", False)                      # default tile (grid=1)
    _check(x, w, b, "tanh", True, row_tile=64)             # forced multi-step grid
    _check(x, w, b, "none", False, use_weight=False)       # bias-only path

    # Small / awkward shapes: exercises the D-padding (32 -> 128) and row padding (10 -> 16).
    N2, D2 = 10, 32
    x2 = jax.random.normal(k_x2, (N2, D2), dtype=jnp.float32)
    w2 = 0.1 * jax.random.normal(k_w, (D2, D2), dtype=jnp.float32)
    b2 = jnp.zeros((1, D2), dtype=jnp.float32)                    # module's zero init
    _check(x2, w2, b2, "sigmoid", False)

    # bf16 streaming (half the HBM bytes for the bandwidth-bound stream).
    x3 = jax.random.normal(k_x3, (N, D), dtype=jnp.bfloat16)
    _check(x3, w, b, "sigmoid", False, atol=5e-2, rtol=5e-2)

    print("KERNEL_OK")
</pallas_src>

<mosaic_0001>
module attributes {stable_mosaic.version = 11 : i64} {
  func.func @_bias_layer_kernel(%arg0: i32, %arg1: memref<256x128xf32, #tpu.memory_space<vmem>>, %arg2: memref<128x128xf32, #tpu.memory_space<vmem>>, %arg3: memref<1x128xf32, #tpu.memory_space<vmem>>, %arg4: memref<256x128xf32, #tpu.memory_space<vmem>>) attributes {dimension_semantics = [#tpu.dimension_semantics<parallel>], iteration_bounds = array<i64: 1>, scalar_prefetch = 0 : i64, scratch_operands = 0 : i64, tpu.core_type = #tpu.core_type<tc>, window_params = [{transform_indices = @transform_0, window_bounds = array<i64: 256, 128>}, {pipeline_mode = #tpu.pipeline_mode<synchronous>, transform_indices = @transform_1, window_bounds = array<i64: 128, 128>}, {pipeline_mode = #tpu.pipeline_mode<synchronous>, transform_indices = @transform_2, window_bounds = array<i64: 1, 128>}, {transform_indices = @transform_3, window_bounds = array<i64: 256, 128>}]} {
    %c0 = arith.constant 0 : index
    %c0_0 = arith.constant 0 : index
    %0 = vector.load %arg1[%c0, %c0_0] : memref<256x128xf32, #tpu.memory_space<vmem>>, vector<256x128xf32>
    %1 = arith.mulf %0, %0 : vector<256x128xf32>
    %cst = arith.constant dense<0.000000e+00> : vector<256xf32>
    %2 = vector.multi_reduction <add>, %1, %cst [1] : vector<256x128xf32> to vector<256xf32>
    %3 = vector.shape_cast %2 : vector<256xf32> to vector<256x1xf32>
    %cst_1 = arith.constant 1.000000e-24 : f32
    %4 = vector.broadcast %cst_1 : f32 to vector<256x1xf32>
    %5 = arith.maximumf %3, %4 : vector<256x1xf32>
    %6 = math.rsqrt %5 : vector<256x1xf32>
    %7 = vector.broadcast %6 : vector<256x1xf32> to vector<256x128xf32>
    %8 = arith.mulf %0, %7 : vector<256x128xf32>
    %c0_2 = arith.constant 0 : index
    %c0_3 = arith.constant 0 : index
    %9 = vector.load %arg2[%c0_2, %c0_3] : memref<128x128xf32, #tpu.memory_space<vmem>>, vector<128x128xf32>
    %c0_4 = arith.constant 0 : index
    %c0_5 = arith.constant 0 : index
    %10 = vector.load %arg3[%c0_4, %c0_5] : memref<1x128xf32, #tpu.memory_space<vmem>>, vector<1x128xf32>
    %cst_6 = arith.constant dense<0.000000e+00> : vector<256x128xf32>
    %11 = tpu.matmul %8, %9, %cst_6 {dimension_numbers = #tpu.dot_dimension_numbers<[1], [0], [0], [1], [0, 0, 1, 1], [], []>} : vector<256x128xf32>, vector<128x128xf32>, vector<256x128xf32> -> vector<256x128xf32>
    %12 = vector.broadcast %10 : vector<1x128xf32> to vector<256x128xf32>
    %13 = arith.addf %11, %12 : vector<256x128xf32>
    %c0_7 = arith.constant 0 : index
    %c0_8 = arith.constant 0 : index
    %14 = vector.load %arg4[%c0_7, %c0_8] : memref<256x128xf32, #tpu.memory_space<vmem>>, vector<256x128xf32>
    tpu.vector_store %arg4[%c0_7, %c0_8], %13 {strides = array<i32>} : memref<256x128xf32, #tpu.memory_space<vmem>>, vector<256x128xf32>,
    return
  }
  func.func @transform_0(%arg0: i32) -> (i32, i32) {
    %c0_i32 = arith.constant 0 : i32
    %c0_i32_0 = arith.constant 0 : i32
    return %arg0, %c0_i32 : i32, i32
  }
  func.func @transform_1(%arg0: i32) -> (i32, i32) {
    %c0_i32 = arith.constant 0 : i32
    %c0_i32_0 = arith.constant 0 : i32
    %c0_i32_1 = arith.constant 0 : i32
    return %c0_i32, %c0_i32_0 : i32, i32
  }
  func.func @transform_2(%arg0: i32) -> (i32, i32) {
    %c0_i32 = arith.constant 0 : i32
    %c0_i32_0 = arith.constant 0 : i32
    %c0_i32_1 = arith.constant 0 : i32
    return %c0_i32, %c0_i32_0 : i32, i32
  }
  func.func @transform_3(%arg0: i32) -> (i32, i32) {
    %c0_i32 = arith.constant 0 : i32
    %c0_i32_0 = arith.constant 0 : i32
    return %arg0, %c0_i32 : i32, i32
  }
}

</mosaic_0001>

<llo_original>
// kernel: tpu_custom_call.1
$region0: #{tpu_custom_call.1}
  #allocation0 [shape = 'u32[]', space=smem, size = 0x4, offset = 0x4, fixed_abs, tag = 'smem constant byte address 0x4 - core index']
  #allocation1 [shape = 'u32[144,128]{1,0:T(1,128)}', space=vmem, size = 0x12000, scoped, tag = 'internal scratch']
  %s0 = inlined_call_operand.hbm [shape: f32[256,128], index: 0, kind: input, shape index: {}]
  %s1 = inlined_call_operand.hbm [shape: f32[128,128], index: 1, kind: input, shape index: {}]
  %s2 = inlined_call_operand.vmem [shape: f32[1,128], index: 2, kind: input, shape index: {}]
  %s3 = inlined_call_operand.hbm [shape: f32[256,128], index: 3, kind: output, shape index: {}]
  %s4 = sld [smem:[#allocation0]]
  $region30: #{tpu_custom_call.1} parent=0
    _
  %s6 = ssub.s32 1, %s4
  %s7 = scalar_select 0, %s6, %s4
  $region1: #{tpu_custom_call.1} parent=0
    #allocation2 [shape = 'u8[131072]{0}', space=vmem, size = 0x20000, scoped, tag = 'input window, operand 0, single buffered']
    #allocation3 [shape = 's32[1]{0}', space=sflag, size = 0x4, scoped, tag = 'scoped memory for tpu_custom_call.1']
    #allocation4 [shape = 's32[1]{0}', space=sflag, size = 0x4, scoped, tag = 'scoped memory for tpu_custom_call.1']
    #allocation5 [shape = 'u8[65536]{0}', space=vmem, size = 0x10000, scoped, tag = 'input window, operand 1, single buffered']
    #allocation6 [shape = 's32[1]{0}', space=sflag, size = 0x4, scoped, tag = 'scoped memory for tpu_custom_call.1']
    #allocation7 [shape = 'u8[131072]{0}', space=vmem, size = 0x20000, scoped, tag = 'output window, operand 0, single buffered']
    %8 = vsyncpa [#allocation3], 0
    %9 = vsyncpa [#allocation6], 0
    %10 = vsyncpa [#allocation4], 0
    // Predicated region
    $region2: #{tpu_custom_call.1} parent=1 // pred_check
      _
    $region3: #{tpu_custom_call.1} parent=1 // pred_check_branch
      %12 = sbr.rel (0) target = $region5
    $region4: #{tpu_custom_call.1} parent=1 // pred_region
      %s14 = ssub.s32 4096, 4096
      %15 = vsyncadd [#allocation3], %s14
      %s16 = sshll.u32 [#allocation2], 4
      %s17 = int_to_ptr.vmem [resolvable:$true] %s16
      %22 = dma.hbm_to_vmem [thread:$0]  %s0, 4096, %s17, [#allocation3], 128, 128, 8
    $region5: #{tpu_custom_call.1} parent=1 // pred_fallthru
      _
    // Predicated region
    $region6: #{tpu_custom_call.1} parent=1 // pred_check
      _
    $region7: #{tpu_custom_call.1} parent=1 // pred_check_branch
      %24 = sbr.rel (0) target = $region9
    $region8: #{tpu_custom_call.1} parent=1 // pred_region
      %s26 = ssub.s32 2048, 2048
      %27 = vsyncadd [#allocation6], %s26
      %s28 = sshll.u32 [#allocation5], 4
      %s29 = int_to_ptr.vmem [resolvable:$true] %s28
      %34 = dma.hbm_to_vmem [thread:$0]  %s1, 2048, %s29, [#allocation6], 128, 128, 8
    $region9: #{tpu_custom_call.1} parent=1 // pred_fallthru
      _
    // Predicated region
    $region10: #{tpu_custom_call.1} parent=1 // pred_check
      _
    $region11: #{tpu_custom_call.1} parent=1 // pred_check_branch
      %36 = sbr.rel (0) target = $region13
    $region12: #{tpu_custom_call.1} parent=1 // pred_region
      _
    $region13: #{tpu_custom_call.1} parent=1 // pred_fallthru
      _
    // Predicated region
    $region14: #{tpu_custom_call.1} parent=1 // pred_check
      _
    $region15: #{tpu_custom_call.1} parent=1 // pred_check_branch
      %38 = sbr.rel (0) target = $region17
    $region16: #{tpu_custom_call.1} parent=1 // pred_region
      %39 = dma.done [#allocation3], 4096
    $region17: #{tpu_custom_call.1} parent=1 // pred_fallthru
      _
    // Predicated region
    $region18: #{tpu_custom_call.1} parent=1 // pred_check
      _
    $region19: #{tpu_custom_call.1} parent=1 // pred_check_branch
      %41 = sbr.rel (0) target = $region21
    $region20: #{tpu_custom_call.1} parent=1 // pred_region
      %42 = dma.done [#allocation6], 2048
    $region21: #{tpu_custom_call.1} parent=1 // pred_fallthru
      _
    %v43 = vld [vmem:[#allocation2] sm:$0xff]
    %v44 = vld [vmem:[#allocation2 + $0x8] sm:$0xff]
    %v45 = vld [vmem:[#allocation2 + $0x10] sm:$0xff]
    %v46 = vld [vmem:[#allocation2 + $0x18] sm:$0xff]
    %v47 = vld [vmem:[#allocation2 + $0x20] sm:$0xff]
    %v48 = vld [vmem:[#allocation2 + $0x28] sm:$0xff]
    %v49 = vld [vmem:[#allocation2 + $0x30] sm:$0xff]
    %v50 = vld [vmem:[#allocation2 + $0x38] sm:$0xff]
    %v51 = vld [vmem:[#allocation2 + $0x40] sm:$0xff]
    %v52 = vld [vmem:[#allocation2 + $0x48] sm:$0xff]
    %v53 = vld [vmem:[#allocation2 + $0x50] sm:$0xff]
    %v54 = vld [vmem:[#allocation2 + $0x58] sm:$0xff]
    %v55 = vld [vmem:[#allocation2 + $0x60] sm:$0xff]
    %v56 = vld [vmem:[#allocation2 + $0x68] sm:$0xff]
    %v57 = vld [vmem:[#allocation2 + $0x70] sm:$0xff]
    %v58 = vld [vmem:[#allocation2 + $0x78] sm:$0xff]
    %v59 = vld [vmem:[#allocation2 + $0x80] sm:$0xff]
    %v60 = vld [vmem:[#allocation2 + $0x88] sm:$0xff]
    %v61 = vld [vmem:[#allocation2 + $0x90] sm:$0xff]
    %v62 = vld [vmem:[#allocation2 + $0x98] sm:$0xff]
    %v63 = vld [vmem:[#allocation2 + $0xa0] sm:$0xff]
    %v64 = vld [vmem:[#allocation2 + $0xa8] sm:$0xff]
    %v65 = vld [vmem:[#allocation2 + $0xb0] sm:$0xff]
    %v66 = vld [vmem:[#allocation2 + $0xb8] sm:$0xff]
    %v67 = vld [vmem:[#allocation2 + $0xc0] sm:$0xff]
    %v68 = vld [vmem:[#allocation2 + $0xc8] sm:$0xff]
    %v69 = vld [vmem:[#allocation2 + $0xd0] sm:$0xff]
    %v70 = vld [vmem:[#allocation2 + $0xd8] sm:$0xff]
    %v71 = vld [vmem:[#allocation2 + $0xe0] sm:$0xff]
    %v72 = vld [vmem:[#allocation2 + $0xe8] sm:$0xff]
    %v73 = vld [vmem:[#allocation2 + $0xf0] sm:$0xff]
    %v74 = vld [vmem:[#allocation2 + $0xf8] sm:$0xff]
    %v75 = vmul.f32 %v43, %v43
    %v76 = vmul.f32 %v44, %v44
    %v77 = vmul.f32 %v45, %v45
    %v78 = vmul.f32 %v46, %v46
    %v79 = vmul.f32 %v47, %v47
    %v80 = vmul.f32 %v48, %v48
    %v81 = vmul.f32 %v49, %v49
    %v82 = vmul.f32 %v50, %v50
    %v83 = vmul.f32 %v51, %v51
    %v84 = vmul.f32 %v52, %v52
    %v85 = vmul.f32 %v53, %v53
    %v86 = vmul.f32 %v54, %v54
    %v87 = vmul.f32 %v55, %v55
    %v88 = vmul.f32 %v56, %v56
    %v89 = vmul.f32 %v57, %v57
    %v90 = vmul.f32 %v58, %v58
    %v91 = vmul.f32 %v59, %v59
    %v92 = vmul.f32 %v60, %v60
    %v93 = vmul.f32 %v61, %v61
    %v94 = vmul.f32 %v62, %v62
    %v95 = vmul.f32 %v63, %v63
    %v96 = vmul.f32 %v64, %v64
    %v97 = vmul.f32 %v65, %v65
    %v98 = vmul.f32 %v66, %v66
    %v99 = vmul.f32 %v67, %v67
    %v100 = vmul.f32 %v68, %v68
    %v101 = vmul.f32 %v69, %v69
    %v102 = vmul.f32 %v70, %v70
    %v103 = vmul.f32 %v71, %v71
    %v104 = vmul.f32 %v72, %v72
    %v105 = vmul.f32 %v73, %v73
    %v106 = vmul.f32 %v74, %v74
    %107 = vadd.xlane.f32.xlu0 %v75
    %v108 = vpop.xlane.xlu0 %107
    %109 = vadd.xlane.f32.xlu0 %v76
    %v110 = vpop.xlane.xlu0 %109
    %111 = vadd.xlane.f32.xlu0 %v77
    %v112 = vpop.xlane.xlu0 %111
    %113 = vadd.xlane.f32.xlu0 %v78
    %v114 = vpop.xlane.xlu0 %113
    %115 = vadd.xlane.f32.xlu0 %v79
    %v116 = vpop.xlane.xlu0 %115
    %117 = vadd.xlane.f32.xlu0 %v80
    %v118 = vpop.xlane.xlu0 %117
    %119 = vadd.xlane.f32.xlu0 %v81
    %v120 = vpop.xlane.xlu0 %119
    %121 = vadd.xlane.f32.xlu0 %v82
    %v122 = vpop.xlane.xlu0 %121
    %123 = vadd.xlane.f32.xlu0 %v83
    %v124 = vpop.xlane.xlu0 %123
    %125 = vadd.xlane.f32.xlu0 %v84
    %v126 = vpop.xlane.xlu0 %125
    %127 = vadd.xlane.f32.xlu0 %v85
    %v128 = vpop.xlane.xlu0 %127
    %129 = vadd.xlane.f32.xlu0 %v86
    %v130 = vpop.xlane.xlu0 %129
    %131 = vadd.xlane.f32.xlu0 %v87
    %v132 = vpop.xlane.xlu0 %131
    %133 = vadd.xlane.f32.xlu0 %v88
    %v134 = vpop.xlane.xlu0 %133
    %135 = vadd.xlane.f32.xlu0 %v89
    %v136 = vpop.xlane.xlu0 %135
    %137 = vadd.xlane.f32.xlu0 %v90
    %v138 = vpop.xlane.xlu0 %137
    %139 = vadd.xlane.f32.xlu0 %v91
    %v140 = vpop.xlane.xlu0 %139
    %141 = vadd.xlane.f32.xlu0 %v92
    %v142 = vpop.xlane.xlu0 %141
    %143 = vadd.xlane.f32.xlu0 %v93
    %v144 = vpop.xlane.xlu0 %143
    %145 = vadd.xlane.f32.xlu0 %v94
    %v146 = vpop.xlane.xlu0 %145
    %147 = vadd.xlane.f32.xlu0 %v95
    %v148 = vpop.xlane.xlu0 %147
    %149 = vadd.xlane.f32.xlu0 %v96
    %v150 = vpop.xlane.xlu0 %149
    %151 = vadd.xlane.f32.xlu0 %v97
    %v152 = vpop.xlane.xlu0 %151
    %153 = vadd.xlane.f32.xlu0 %v98
    %v154 = vpop.xlane.xlu0 %153
    %155 = vadd.xlane.f32.xlu0 %v99
    %v156 = vpop.xlane.xlu0 %155
    %157 = vadd.xlane.f32.xlu0 %v100
    %v158 = vpop.xlane.xlu0 %157
    %159 = vadd.xlane.f32.xlu0 %v101
    %v160 = vpop.xlane.xlu0 %159
    %161 = vadd.xlane.f32.xlu0 %v102
    %v162 = vpop.xlane.xlu0 %161
    %163 = vadd.xlane.f32.xlu0 %v103
    %v164 = vpop.xlane.xlu0 %163
    %165 = vadd.xlane.f32.xlu0 %v104
    %v166 = vpop.xlane.xlu0 %165
    %167 = vadd.xlane.f32.xlu0 %v105
    %v168 = vpop.xlane.xlu0 %167
    %169 = vadd.xlane.f32.xlu0 %v106
    %v170 = vpop.xlane.xlu0 %169
    %v171 = vmax.f32 %v108, 1e-24
    %v172 = vmax.f32 %v110, 1e-24
    %v173 = vmax.f32 %v112, 1e-24
    %v174 = vmax.f32 %v114, 1e-24
    %v175 = vmax.f32 %v116, 1e-24
    %v176 = vmax.f32 %v118, 1e-24
    %v177 = vmax.f32 %v120, 1e-24
    %v178 = vmax.f32 %v122, 1e-24
    %v179 = vmax.f32 %v124, 1e-24
    %v180 = vmax.f32 %v126, 1e-24
    %v181 = vmax.f32 %v128, 1e-24
    %v182 = vmax.f32 %v130, 1e-24
    %v183 = vmax.f32 %v132, 1e-24
    %v184 = vmax.f32 %v134, 1e-24
    %v185 = vmax.f32 %v136, 1e-24
    %v186 = vmax.f32 %v138, 1e-24
    %v187 = vmax.f32 %v140, 1e-24
    %v188 = vmax.f32 %v142, 1e-24
    %v189 = vmax.f32 %v144, 1e-24
    %v190 = vmax.f32 %v146, 1e-24
    %v191 = vmax.f32 %v148, 1e-24
    %v192 = vmax.f32 %v150, 1e-24
    %v193 = vmax.f32 %v152, 1e-24
    %v194 = vmax.f32 %v154, 1e-24
    %v195 = vmax.f32 %v156, 1e-24
    %v196 = vmax.f32 %v158, 1e-24
    %v197 = vmax.f32 %v160, 1e-24
    %v198 = vmax.f32 %v162, 1e-24
    %v199 = vmax.f32 %v164, 1e-24
    %v200 = vmax.f32 %v166, 1e-24
    %v201 = vmax.f32 %v168, 1e-24
    %v202 = vmax.f32 %v170, 1e-24
    %v203 = vrsqrt.pop %v171
    %v204 = vrsqrt.pop %v172
    %v205 = vrsqrt.pop %v173
    %v206 = vrsqrt.pop %v174
    %v207 = vrsqrt.pop %v175
    %v208 = vrsqrt.pop %v176
    %v209 = vrsqrt.pop %v177
    %v210 = vrsqrt.pop %v178
    %v211 = vrsqrt.pop %v179
    %v212 = vrsqrt.pop %v180
    %v213 = vrsqrt.pop %v181
    %v214 = vrsqrt.pop %v182
    %v215 = vrsqrt.pop %v183
    %v216 = vrsqrt.pop %v184
    %v217 = vrsqrt.pop %v185
    %v218 = vrsqrt.pop %v186
    %v219 = vrsqrt.pop %v187
    %v220 = vrsqrt.pop %v188
    %v221 = vrsqrt.pop %v189
    %v222 = vrsqrt.pop %v190
    %v223 = vrsqrt.pop %v191
    %v224 = vrsqrt.pop %v192
    %v225 = vrsqrt.pop %v193
    %v226 = vrsqrt.pop %v194
    %v227 = vrsqrt.pop %v195
    %v228 = vrsqrt.pop %v196
    %v229 = vrsqrt.pop %v197
    %v230 = vrsqrt.pop %v198
    %v231 = vrsqrt.pop %v199
    %v232 = vrsqrt.pop %v200
    %v233 = vrsqrt.pop %v201
    %v234 = vrsqrt.pop %v202
    %v235 = vmul.f32 %v43, %v203
    %v236 = vmul.f32 %v44, %v204
    %v237 = vmul.f32 %v45, %v205
    %v238 = vmul.f32 %v46, %v206
    %v239 = vmul.f32 %v47, %v207
    %v240 = vmul.f32 %v48, %v208
    %v241 = vmul.f32 %v49, %v209
    %v242 = vmul.f32 %v50, %v210
    %v243 = vmul.f32 %v51, %v211
    %v244 = vmul.f32 %v52, %v212
    %v245 = vmul.f32 %v53, %v213
    %v246 = vmul.f32 %v54, %v214
    %v247 = vmul.f32 %v55, %v215
    %v248 = vmul.f32 %v56, %v216
    %v249 = vmul.f32 %v57, %v217
    %v250 = vmul.f32 %v58, %v218
    %v251 = vmul.f32 %v59, %v219
    %v252 = vmul.f32 %v60, %v220
    %v253 = vmul.f32 %v61, %v221
    %v254 = vmul.f32 %v62, %v222
    %v255 = vmul.f32 %v63, %v223
    %v256 = vmul.f32 %v64, %v224
    %v257 = vmul.f32 %v65, %v225
    %v258 = vmul.f32 %v66, %v226
    %v259 = vmul.f32 %v67, %v227
    %v260 = vmul.f32 %v68, %v228
    %v261 = vmul.f32 %v69, %v229
    %v262 = vmul.f32 %v70, %v230
    %v263 = vmul.f32 %v71, %v231
    %v264 = vmul.f32 %v72, %v232
    %v265 = vmul.f32 %v73, %v233
    %v266 = vmul.f32 %v74, %v234
    %v267 = vld [vmem:[#allocation5] sm:$0xff]
    %v268 = vld [vmem:[#allocation5 + $0x8] sm:$0xff]
    %v269 = vld [vmem:[#allocation5 + $0x10] sm:$0xff]
    %v270 = vld [vmem:[#allocation5 + $0x18] sm:$0xff]
    %v271 = vld [vmem:[#allocation5 + $0x20] sm:$0xff]
    %v272 = vld [vmem:[#allocation5 + $0x28] sm:$0xff]
    %v273 = vld [vmem:[#allocation5 + $0x30] sm:$0xff]
    %v274 = vld [vmem:[#allocation5 + $0x38] sm:$0xff]
    %v275 = vld [vmem:[#allocation5 + $0x40] sm:$0xff]
    %v276 = vld [vmem:[#allocation5 + $0x48] sm:$0xff]
    %v277 = vld [vmem:[#allocation5 + $0x50] sm:$0xff]
    %v278 = vld [vmem:[#allocation5 + $0x58] sm:$0xff]
    %v279 = vld [vmem:[#allocation5 + $0x60] sm:$0xff]
    %v280 = vld [vmem:[#allocation5 + $0x68] sm:$0xff]
    %v281 = vld [vmem:[#allocation5 + $0x70] sm:$0xff]
    %v282 = vld [vmem:[#allocation5 + $0x78] sm:$0xff]
    %v283 = vld [vmem:[%s2] sm:$0x1]
    %v285 = vlaneseq
    %v286 = vshrl.u32 %v285, 7
    %v287 = vsub.s32 0, %v286
    %v288 = vrot.slane %v283, %v287
    %290 = vmatprep.subr.mxu0 0.0
    %291 = vmatpush1.msra.mxu0 %v282
    %292 = vmatprep.subr.mxu0 0.0
    %293 = vmatpush1.msra.mxu0 %v281
    %294 = vmatprep.subr.mxu0 0.0
    %295 = vmatpush1.msra.mxu0 %v280
    %296 = vmatprep.subr.mxu0 0.0
    %297 = vmatpush1.msra.mxu0 %v279
    %298 = vmatprep.subr.mxu0 0.0
    %299 = vmatpush1.msra.mxu0 %v278
    %300 = vmatprep.subr.mxu0 0.0
    %301 = vmatpush1.msra.mxu0 %v277
    %302 = vmatprep.subr.mxu0 0.0
    %303 = vmatpush1.msra.mxu0 %v276
    %304 = vmatprep.subr.mxu0 0.0
    %305 = vmatpush1.msra.mxu0 %v275
    %306 = vmatprep.subr.mxu0 0.0
    %307 = vmatpush1.msra.mxu0 %v274
    %308 = vmatprep.subr.mxu0 0.0
    %309 = vmatpush1.msra.mxu0 %v273
    %310 = vmatprep.subr.mxu0 0.0
    %311 = vmatpush1.msra.mxu0 %v272
    %312 = vmatprep.subr.mxu0 0.0
    %313 = vmatpush1.msra.mxu0 %v271
    %314 = vmatprep.subr.mxu0 0.0
    %315 = vmatpush1.msra.mxu0 %v270
    %316 = vmatprep.subr.mxu0 0.0
    %317 = vmatpush1.msra.mxu0 %v269
    %318 = vmatprep.subr.mxu0 0.0
    %319 = vmatpush1.msra.mxu0 %v268
    %320 = vmatprep.subr.mxu0 0.0
    %321 = vmatpush1.msra.mxu0 %v267
    %322 = vmatprep.subr.mxu0 0.0
    %323 = vmatpush2.msra.mxu0 0.0
    %324 = vmatprep.subr.mxu0 0.0
    %325 = vmatpush2.msra.mxu0 0.0
    %326 = vmatprep.subr.mxu0 0.0
    %327 = vmatpush2.msra.mxu0 0.0
    %328 = vmatprep.subr.mxu0 0.0
    %329 = vmatpush2.msra.mxu0 0.0
    %330 = vmatprep.subr.mxu0 0.0
    %331 = vmatpush2.msra.mxu0 0.0
    %332 = vmatprep.subr.mxu0 0.0
    %333 = vmatpush2.msra.mxu0 0.0
    %334 = vmatprep.subr.mxu0 0.0
    %335 = vmatpush2.msra.mxu0 0.0
    %336 = vmatprep.subr.mxu0 0.0
    %337 = vmatpush2.msra.mxu0 0.0
    %338 = vmatprep.subr.mxu0 0.0
    %339 = vmatpush2.msra.mxu0 0.0
    %340 = vmatprep.subr.mxu0 0.0
    %341 = vmatpush2.msra.mxu0 0.0
    %342 = vmatprep.subr.mxu0 0.0
    %343 = vmatpush2.msra.mxu0 0.0
    %344 = vmatprep.subr.mxu0 0.0
    %345 = vmatpush2.msra.mxu0 0.0
    %346 = vmatprep.subr.mxu0 0.0
    %347 = vmatpush2.msra.mxu0 0.0
    %348 = vmatprep.subr.mxu0 0.0
    %349 = vmatpush2.msra.mxu0 0.0
    %350 = vmatprep.subr.mxu0 0.0
    %351 = vmatpush2.msra.mxu0 0.0
    %352 = vmatprep.subr.mxu0 0.0
    %353 = vmatpush2.msra.mxu0 0.0
    %354 = vmatprep.mubr.f32.mxu0 0.0
    %355 = vmatmul.mubr.f32.gmra.mxu0 %v235
    %v356 = vpop.f32.mrf.mxu0
    %v357 = vadd.f32 %v288, %v356
    %v358 = vpop.f32.mrf.mxu0
    %359 = vmatprep.mubr.f32.mxu0 0.0
    %360 = vmatmul.mubr.f32.gmra.mxu0 %v236
    %v361 = vpop.f32.mrf.mxu0
    %v362 = vadd.f32 %v288, %v361
    %v363 = vpop.f32.mrf.mxu0
    %364 = vmatprep.mubr.f32.mxu0 0.0
    %365 = vmatmul.mubr.f32.gmra.mxu0 %v237
    %v366 = vpop.f32.mrf.mxu0
    %v367 = vadd.f32 %v288, %v366
    %v368 = vpop.f32.mrf.mxu0
    %369 = vmatprep.mubr.f32.mxu0 0.0
    %370 = vmatmul.mubr.f32.gmra.mxu0 %v238
    %v371 = vpop.f32.mrf.mxu0
    %v372 = vadd.f32 %v288, %v371
    %v373 = vpop.f32.mrf.mxu0
    %374 = vmatprep.mubr.f32.mxu0 0.0
    %375 = vmatmul.mubr.f32.gmra.mxu0 %v239
    %v376 = vpop.f32.mrf.mxu0
    %v377 = vadd.f32 %v288, %v376
    %v378 = vpop.f32.mrf.mxu0
    %379 = vmatprep.mubr.f32.mxu0 0.0
    %380 = vmatmul.mubr.f32.gmra.mxu0 %v240
    %v381 = vpop.f32.mrf.mxu0
    %v382 = vadd.f32 %v288, %v381
    %v383 = vpop.f32.mrf.mxu0
    %384 = vmatprep.mubr.f32.mxu0 0.0
    %385 = vmatmul.mubr.f32.gmra.mxu0 %v241
    %v386 = vpop.f32.mrf.mxu0
    %v387 = vadd.f32 %v288, %v386
    %v388 = vpop.f32.mrf.mxu0
    %389 = vmatprep.mubr.f32.mxu0 0.0
    %390 = vmatmul.mubr.f32.gmra.mxu0 %v242
    %v391 = vpop.f32.mrf.mxu0
    %v392 = vadd.f32 %v288, %v391
    %v393 = vpop.f32.mrf.mxu0
    %394 = vmatprep.mubr.f32.mxu0 0.0
    %395 = vmatmul.mubr.f32.gmra.mxu0 %v243
    %v396 = vpop.f32.mrf.mxu0
    %v397 = vadd.f32 %v288, %v396
    %v398 = vpop.f32.mrf.mxu0
    %399 = vmatprep.mubr.f32.mxu0 0.0
    %400 = vmatmul.mubr.f32.gmra.mxu0 %v244
    %v401 = vpop.f32.mrf.mxu0
    %v402 = vadd.f32 %v288, %v401
    %v403 = vpop.f32.mrf.mxu0
    %404 = vmatprep.mubr.f32.mxu0 0.0
    %405 = vmatmul.mubr.f32.gmra.mxu0 %v245
    %v406 = vpop.f32.mrf.mxu0
    %v407 = vadd.f32 %v288, %v406
    %v408 = vpop.f32.mrf.mxu0
    %409 = vmatprep.mubr.f32.mxu0 0.0
    %410 = vmatmul.mubr.f32.gmra.mxu0 %v246
    %v411 = vpop.f32.mrf.mxu0
    %v412 = vadd.f32 %v288, %v411
    %v413 = vpop.f32.mrf.mxu0
    %414 = vmatprep.mubr.f32.mxu0 0.0
    %415 = vmatmul.mubr.f32.gmra.mxu0 %v247
    %v416 = vpop.f32.mrf.mxu0
    %v417 = vadd.f32 %v288, %v416
    %v418 = vpop.f32.mrf.mxu0
    %419 = vmatprep.mubr.f32.mxu0 0.0
    %420 = vmatmul.mubr.f32.gmra.mxu0 %v248
    %v421 = vpop.f32.mrf.mxu0
    %v422 = vadd.f32 %v288, %v421
    %v423 = vpop.f32.mrf.mxu0
    %424 = vmatprep.mubr.f32.mxu0 0.0
    %425 = vmatmul.mubr.f32.gmra.mxu0 %v249
    %v426 = vpop.f32.mrf.mxu0
    %v427 = vadd.f32 %v288, %v426
    %v428 = vpop.f32.mrf.mxu0
    %429 = vmatprep.mubr.f32.mxu0 0.0
    %430 = vmatmul.mubr.f32.gmra.mxu0 %v250
    %v431 = vpop.f32.mrf.mxu0
    %v432 = vadd.f32 %v288, %v431
    %v433 = vpop.f32.mrf.mxu0
    %434 = vmatprep.mubr.f32.mxu0 0.0
    %435 = vmatmul.mubr.f32.gmra.mxu0 %v251
    %v436 = vpop.f32.mrf.mxu0
    %v437 = vadd.f32 %v288, %v436
    %v438 = vpop.f32.mrf.mxu0
    %439 = vmatprep.mubr.f32.mxu0 0.0
    %440 = vmatmul.mubr.f32.gmra.mxu0 %v252
    %v441 = vpop.f32.mrf.mxu0
    %v442 = vadd.f32 %v288, %v441
    %v443 = vpop.f32.mrf.mxu0
    %444 = vmatprep.mubr.f32.mxu0 0.0
    %445 = vmatmul.mubr.f32.gmra.mxu0 %v253
    %v446 = vpop.f32.mrf.mxu0
    %v447 = vadd.f32 %v288, %v446
    %v448 = vpop.f32.mrf.mxu0
    %449 = vmatprep.mubr.f32.mxu0 0.0
    %450 = vmatmul.mubr.f32.gmra.mxu0 %v254
    %v451 = vpop.f32.mrf.mxu0
    %v452 = vadd.f32 %v288, %v451
    %v453 = vpop.f32.mrf.mxu0
    %454 = vmatprep.mubr.f32.mxu0 0.0
    %455 = vmatmul.mubr.f32.gmra.mxu0 %v255
    %v456 = vpop.f32.mrf.mxu0
    %v457 = vadd.f32 %v288, %v456
    %v458 = vpop.f32.mrf.mxu0
    %459 = vmatprep.mubr.f32.mxu0 0.0
    %460 = vmatmul.mubr.f32.gmra.mxu0 %v256
    %v461 = vpop.f32.mrf.mxu0
    %v462 = vadd.f32 %v288, %v461
    %v463 = vpop.f32.mrf.mxu0
    %464 = vmatprep.mubr.f32.mxu0 0.0
    %465 = vmatmul.mubr.f32.gmra.mxu0 %v257
    %v466 = vpop.f32.mrf.mxu0
    %v467 = vadd.f32 %v288, %v466
    %v468 = vpop.f32.mrf.mxu0
    %469 = vmatprep.mubr.f32.mxu0 0.0
    %470 = vmatmul.mubr.f32.gmra.mxu0 %v258
    %v471 = vpop.f32.mrf.mxu0
    %v472 = vadd.f32 %v288, %v471
    %v473 = vpop.f32.mrf.mxu0
    %474 = vmatprep.mubr.f32.mxu0 0.0
    %475 = vmatmul.mubr.f32.gmra.mxu0 %v259
    %v476 = vpop.f32.mrf.mxu0
    %v477 = vadd.f32 %v288, %v476
    %v478 = vpop.f32.mrf.mxu0
    %479 = vmatprep.mubr.f32.mxu0 0.0
    %480 = vmatmul.mubr.f32.gmra.mxu0 %v260
    %v481 = vpop.f32.mrf.mxu0
    %v482 = vadd.f32 %v288, %v481
    %v483 = vpop.f32.mrf.mxu0
    %484 = vmatprep.mubr.f32.mxu0 0.0
    %485 = vmatmul.mubr.f32.gmra.mxu0 %v261
    %v486 = vpop.f32.mrf.mxu0
    %v487 = vadd.f32 %v288, %v486
    %v488 = vpop.f32.mrf.mxu0
    %489 = vmatprep.mubr.f32.mxu0 0.0
    %490 = vmatmul.mubr.f32.gmra.mxu0 %v262
    %v491 = vpop.f32.mrf.mxu0
    %v492 = vadd.f32 %v288, %v491
    %v493 = vpop.f32.mrf.mxu0
    %494 = vmatprep.mubr.f32.mxu0 0.0
    %495 = vmatmul.mubr.f32.gmra.mxu0 %v263
    %v496 = vpop.f32.mrf.mxu0
    %v497 = vadd.f32 %v288, %v496
    %v498 = vpop.f32.mrf.mxu0
    %499 = vmatprep.mubr.f32.mxu0 0.0
    %500 = vmatmul.mubr.f32.gmra.mxu0 %v264
    %v501 = vpop.f32.mrf.mxu0
    %v502 = vadd.f32 %v288, %v501
    %v503 = vpop.f32.mrf.mxu0
    %504 = vmatprep.mubr.f32.mxu0 0.0
    %505 = vmatmul.mubr.f32.gmra.mxu0 %v265
    %v506 = vpop.f32.mrf.mxu0
    %v507 = vadd.f32 %v288, %v506
    %v508 = vpop.f32.mrf.mxu0
    %509 = vmatprep.mubr.f32.mxu0 0.0
    %510 = vmatmul.mubr.f32.gmra.mxu0 %v266
    %v511 = vpop.f32.mrf.mxu0
    %v512 = vadd.f32 %v288, %v511
    %v513 = vpop.f32.mrf.mxu0
    %514 = vdwg.mxu0
    %515 = vst [vmem:[#allocation7] sm:$0xff] %v357
    %516 = vst [vmem:[#allocation7 + $0x8] sm:$0xff] %v362
    %517 = vst [vmem:[#allocation7 + $0x10] sm:$0xff] %v367
    %518 = vst [vmem:[#allocation7 + $0x18] sm:$0xff] %v372
    %519 = vst [vmem:[#allocation7 + $0x20] sm:$0xff] %v377
    %520 = vst [vmem:[#allocation7 + $0x28] sm:$0xff] %v382
    %521 = vst [vmem:[#allocation7 + $0x30] sm:$0xff] %v387
    %522 = vst [vmem:[#allocation7 + $0x38] sm:$0xff] %v392
    %523 = vst [vmem:[#allocation7 + $0x40] sm:$0xff] %v397
    %524 = vst [vmem:[#allocation7 + $0x48] sm:$0xff] %v402
    %525 = vst [vmem:[#allocation7 + $0x50] sm:$0xff] %v407
    %526 = vst [vmem:[#allocation7 + $0x58] sm:$0xff] %v412
    %527 = vst [vmem:[#allocation7 + $0x60] sm:$0xff] %v417
    %528 = vst [vmem:[#allocation7 + $0x68] sm:$0xff] %v422
    %529 = vst [vmem:[#allocation7 + $0x70] sm:$0xff] %v427
    %530 = vst [vmem:[#allocation7 + $0x78] sm:$0xff] %v432
    %531 = vst [vmem:[#allocation7 + $0x80] sm:$0xff] %v437
    %532 = vst [vmem:[#allocation7 + $0x88] sm:$0xff] %v442
    %533 = vst [vmem:[#allocation7 + $0x90] sm:$0xff] %v447
    %534 = vst [vmem:[#allocation7 + $0x98] sm:$0xff] %v452
    %535 = vst [vmem:[#allocation7 + $0xa0] sm:$0xff] %v457
    %536 = vst [vmem:[#allocation7 + $0xa8] sm:$0xff] %v462
    %537 = vst [vmem:[#allocation7 + $0xb0] sm:$0xff] %v467
    %538 = vst [vmem:[#allocation7 + $0xb8] sm:$0xff] %v472
    %539 = vst [vmem:[#allocation7 + $0xc0] sm:$0xff] %v477
    %540 = vst [vmem:[#allocation7 + $0xc8] sm:$0xff] %v482
    %541 = vst [vmem:[#allocation7 + $0xd0] sm:$0xff] %v487
    %542 = vst [vmem:[#allocation7 + $0xd8] sm:$0xff] %v492
    %543 = vst [vmem:[#allocation7 + $0xe0] sm:$0xff] %v497
    %544 = vst [vmem:[#allocation7 + $0xe8] sm:$0xff] %v502
    %545 = vst [vmem:[#allocation7 + $0xf0] sm:$0xff] %v507
    %546 = vst [vmem:[#allocation7 + $0xf8] sm:$0xff] %v512
    // Predicated region
    $region22: #{tpu_custom_call.1} parent=1 // pred_check
      _
    $region23: #{tpu_custom_call.1} parent=1 // pred_check_branch
      %548 = sbr.rel (0) target = $region25
    $region24: #{tpu_custom_call.1} parent=1 // pred_region
      %s550 = ssub.s32 4096, 4096
      %551 = vsyncadd [#allocation4], %s550
      %s552 = sshll.u32 [#allocation7], 4
      %s553 = int_to_ptr.vmem [resolvable:$true] %s552
      %558 = dma.vmem_to_hbm [thread:$0]  %s553, 4096, %s3, [#allocation4], 128, 128, 8
    $region25: #{tpu_custom_call.1} parent=1 // pred_fallthru
      _
    // Predicated region
    $region26: #{tpu_custom_call.1} parent=1 // pred_check
      _
    $region27: #{tpu_custom_call.1} parent=1 // pred_check_branch
      %560 = sbr.rel (0) target = $region29
    $region28: #{tpu_custom_call.1} parent=1 // pred_region
      %561 = dma.done [#allocation4], 4096
    $region29: #{tpu_custom_call.1} parent=1 // pred_fallthru
      _
    %562 = vsyncpa [#allocation3], 1
    %563 = vsyncpa [#allocation6], 1
    %564 = vsyncpa [#allocation4], 1

</llo_original>
